<compile_context>
chip_gen: v7x
topology: tpu7x:2x2x1
jax: 0.10.0
libtpu: 0.0.40
codegen_flags: <defaults>
</compile_context>

<pallas_src>
import jax
import jax.numpy as jnp
from jax.experimental import pallas as pl
from jax.experimental.pallas import tpu as pltpu


def _cdiv(a, b):
    return -(-a // b)


def _round_up(n, m):
    return ((n + m - 1) // m) * m


def _fc_sent_kernel(x_ref, w1_ref, b1_ref, w2_ref, b2_ref, w3_ref, b3_ref,
                    w4_ref, b4_ref, o_ref):
    """Fused 4-layer MLP (Linear+ReLU x3, Linear) on one (packed) row-tile."""
    # Hoist all loads once per grid step (weights/biases are small & resident).
    x = x_ref[...]
    w1, b1 = w1_ref[...], b1_ref[...]
    w2, b2 = w2_ref[...], b2_ref[...]
    w3, b3 = w3_ref[...], b3_ref[...]
    w4, b4 = w4_ref[...], b4_ref[...]

    # bf16 (or f32) MXU operands; f32 accumulation; f32 bias add + ReLU.
    h = jnp.dot(x, w1, preferred_element_type=jnp.float32) + b1
    h = jnp.maximum(h, 0.0)

    h = jnp.dot(h.astype(w2.dtype), w2, preferred_element_type=jnp.float32) + b2
    h = jnp.maximum(h, 0.0)

    h = jnp.dot(h.astype(w3.dtype), w3, preferred_element_type=jnp.float32) + b3
    h = jnp.maximum(h, 0.0)

    y = jnp.dot(h.astype(w4.dtype), w4, preferred_element_type=jnp.float32) + b4
    o_ref[...] = y.astype(o_ref.dtype)


def _block_diag(w, p):
    """[in, out] -> block-diagonal [p*in, p*out] with w repeated on the diagonal."""
    if p == 1:
        return w
    fin, fout = w.shape
    eye = jnp.eye(p, dtype=w.dtype)
    bd = eye[:, :, None, None] * w[None, None, :, :]          # [p, p, fin, fout]
    return bd.transpose(0, 2, 1, 3).reshape(p * fin, p * fout)


def _choose_packed_tiling(mp_rows):
    """Pick (tile_mp, padded_mp) in PACKED rows.

    * <=64 packed rows (<=256 original rows): single grid step (per-step overhead
      dominates otherwise).
    * otherwise: >=2 grid steps (so the v7x megacore shards rows across both
      TensorCores), tiles capped at ~1024 packed rows (~4096 original rows) which
      keeps the double-buffered x/out streams well inside VMEM on every generation.
    Tiles are multiples of 16 rows (sublane-aligned for both f32 and packed bf16).
    """
    mp_al = _round_up(max(mp_rows, 1), 16)
    if mp_al <= 64:
        return mp_al, mp_al
    n_tiles = max(2, _cdiv(mp_al, 1024))
    tile = _round_up(_cdiv(mp_al, n_tiles), 16)
    return tile, tile * n_tiles


def generator_fc_sent(random_input, params, *, use_bf16=True, out_dtype=None):
    """Pallas forward pass for the FC_sent 4-layer MLP.

    random_input: [..., R]  (any leading dims, like nn.Linear)
    params: dict with w1,b1,w2,b2,w3,b3,w4,b4 (weights [in, out], biases [1, out])
    use_bf16: bf16 MXU operands (default). f32 accumulation / bias / ReLU are kept.
    out_dtype: output dtype (default: input dtype). Pass jnp.bfloat16 to halve the
               dominant output HBM stream when the downstream scorer accepts it.
    """
    w1, b1 = params["w1"], params["b1"]
    w2, b2 = params["w2"], params["b2"]
    w3, b3 = params["w3"], params["b3"]
    w4, b4 = params["w4"], params["b4"]

    R = w1.shape[0]
    E = w4.shape[1]

    lead_shape = random_input.shape[:-1]
    x2d = random_input.reshape(-1, R)
    M = x2d.shape[0]

    if out_dtype is None:
        out_dtype = random_input.dtype

    # Row-packing factor: pack `pack` consecutive rows into one lane-dense (128-wide)
    # packed row; the weights become block-diagonal so the math is unchanged.
    pack = 128 // R if (R < 128 and 128 % R == 0) else 1

    mp_rows = _cdiv(M, pack)
    tile_mp, mp_padded = _choose_packed_tiling(mp_rows)
    m_padded = mp_padded * pack
    if m_padded != M:
        # Zero-padded rows only carry bias-driven values and are sliced off below.
        x2d = jnp.pad(x2d, ((0, m_padded - M), (0, 0)))
    xp = x2d.reshape(mp_padded, pack * R)            # free row-major view

    # Block-diagonal packed weights / tiled biases (tiny: ~1 MiB total).
    w1p = _block_diag(w1, pack)                      # [pack*R, pack*H]
    w2p = _block_diag(w2, pack)                      # [pack*H, pack*H]
    w3p = _block_diag(w3, pack)                      # [pack*H, pack*H]
    w4p = _block_diag(w4, pack)                      # [pack*H, pack*E]
    b1p = jnp.tile(b1, (1, pack))
    b2p = jnp.tile(b2, (1, pack))
    b3p = jnp.tile(b3, (1, pack))
    b4p = jnp.tile(b4, (1, pack))

    if use_bf16:
        xp = xp.astype(jnp.bfloat16)
        w1p = w1p.astype(jnp.bfloat16)
        w2p = w2p.astype(jnp.bfloat16)
        w3p = w3p.astype(jnp.bfloat16)
        w4p = w4p.astype(jnp.bfloat16)

    grid = (mp_padded // tile_mp,)

    # Weights/biases are full-array blocks shared by every row tile; their block
    # index never changes, so Pallas does not re-DMA them across grid steps.
    full = lambda shape: pl.BlockSpec(shape, lambda i: (0,) * len(shape))

    out = pl.pallas_call(
        _fc_sent_kernel,
        out_shape=jax.ShapeDtypeStruct((mp_padded, pack * E), out_dtype),
        grid=grid,
        in_specs=[
            pl.BlockSpec((tile_mp, pack * R), lambda i: (i, 0)),   # packed x tile (lane-dense)
            full(w1p.shape), full(b1p.shape),
            full(w2p.shape), full(b2p.shape),
            full(w3p.shape), full(b3p.shape),
            full(w4p.shape), full(b4p.shape),
        ],
        out_specs=pl.BlockSpec((tile_mp, pack * E), lambda i: (i, 0)),  # lane-dense (pack*E)
        compiler_params=pltpu.CompilerParams(
            dimension_semantics=("parallel",),
            vmem_limit_bytes=32 * 1024 * 1024),
    )(xp, w1p, b1p, w2p, b2p, w3p, b3p, w4p, b4p)

    out = out.reshape(m_padded, E)                   # free row-major view
    if m_padded != M:
        out = out[:M]                                # drop zero-padded rows
    return out.reshape(*lead_shape, E)


def _init_linear(key, fan_in, fan_out, dtype=jnp.float32):
    """Deterministic init mimicking PyTorch nn.Linear defaults (uniform +-1/sqrt(fan_in)).
    Weight returned as [in, out]; bias as [1, out]."""
    kw, kb = jax.random.split(key)
    bound = 1.0 / jnp.sqrt(jnp.asarray(fan_in, dtype))
    w = jax.random.uniform(kw, (fan_in, fan_out), dtype, -bound, bound)
    b = jax.random.uniform(kb, (1, fan_out), dtype, -bound, bound)
    return w, b


def _reference_fc_sent(x, params):
    """Pure-JAX reference (same math as the PyTorch nn.Sequential), f32."""
    h = jnp.maximum(x @ params["w1"] + params["b1"], 0.0)
    h = jnp.maximum(h @ params["w2"] + params["b2"], 0.0)
    h = jnp.maximum(h @ params["w3"] + params["b3"], 0.0)
    return h @ params["w4"] + params["b4"]


if __name__ == "__main__":
    # args: random_input_size=32, size_hidden_layers=64, size_embedding=128 (FC_sent)
    R, H, E = 32, 64, 128

    key = jax.random.PRNGKey(0)
    k_x1, k_x2, k_x3, k1, k2, k3, k4 = jax.random.split(key, 7)

    w1, b1 = _init_linear(k1, R, H)
    w2, b2 = _init_linear(k2, H, H)
    w3, b3 = _init_linear(k3, H, H)
    w4, b4 = _init_linear(k4, H, E)
    params = dict(w1=w1, b1=b1, w2=w2, b2=b2, w3=w3, b3=b3, w4=w4, b4=b4)

    # Case 1: small aligned problem -> single packed grid step.
    x1 = jax.random.normal(k_x1, (2, 8, R), dtype=jnp.float32)   # 16 rows
    ref1 = _reference_fc_sent(x1, params)
    out1 = jax.block_until_ready(generator_fc_sent(x1, params))  # bf16 default path
    assert out1.shape == (2, 8, E), out1.shape
    assert out1.dtype == jnp.float32, out1.dtype
    assert jnp.allclose(out1, ref1, atol=5e-2, rtol=5e-2), "mismatch (bf16, aligned)"

    out1_f32 = jax.block_until_ready(generator_fc_sent(x1, params, use_bf16=False))
    assert jnp.allclose(out1_f32, ref1, atol=1e-4, rtol=1e-4), "mismatch (f32, aligned)"

    # Case 2: row count not a multiple of the pack factor -> exercises padding path.
    x2 = jax.random.normal(k_x2, (3, 5, R), dtype=jnp.float32)   # 15 rows
    ref2 = _reference_fc_sent(x2, params)
    out2 = jax.block_until_ready(generator_fc_sent(x2, params, use_bf16=False))
    assert out2.shape == (3, 5, E), out2.shape
    assert jnp.allclose(out2, ref2, atol=1e-4, rtol=1e-4), "mismatch (f32, padded)"

    # Case 3: mid-size problem -> >=2 parallel row tiles (v7x megacore path).
    x3 = jax.random.normal(k_x3, (4, 80, R), dtype=jnp.float32)  # 320 rows
    ref3 = _reference_fc_sent(x3, params)
    out3 = jax.block_until_ready(generator_fc_sent(x3, params))
    assert out3.shape == (4, 80, E), out3.shape
    assert jnp.allclose(out3, ref3, atol=5e-2, rtol=5e-2), "mismatch (bf16, mid-size)"

    # bf16 output option (halves the dominant output HBM stream).
    out3_bf16 = jax.block_until_ready(
        generator_fc_sent(x3, params, out_dtype=jnp.bfloat16))
    assert out3_bf16.dtype == jnp.bfloat16, out3_bf16.dtype
    assert jnp.allclose(out3_bf16.astype(jnp.float32), ref3, atol=5e-2, rtol=5e-2), \
        "mismatch (bf16 output)"

    print("KERNEL_OK")
</pallas_src>

<mosaic_0001>
module attributes {stable_mosaic.version = 11 : i64} {
  func.func @_fc_sent_kernel(%arg0: i32, %arg1: memref<16x128xbf16, #tpu.memory_space<vmem>>, %arg2: memref<128x256xbf16, #tpu.memory_space<vmem>>, %arg3: memref<1x256xf32, #tpu.memory_space<vmem>>, %arg4: memref<256x256xbf16, #tpu.memory_space<vmem>>, %arg5: memref<1x256xf32, #tpu.memory_space<vmem>>, %arg6: memref<256x256xbf16, #tpu.memory_space<vmem>>, %arg7: memref<1x256xf32, #tpu.memory_space<vmem>>, %arg8: memref<256x512xbf16, #tpu.memory_space<vmem>>, %arg9: memref<1x512xf32, #tpu.memory_space<vmem>>, %arg10: memref<16x512xf32, #tpu.memory_space<vmem>>) attributes {dimension_semantics = [#tpu.dimension_semantics<parallel>], iteration_bounds = array<i64: 1>, scalar_prefetch = 0 : i64, scratch_operands = 0 : i64, tpu.core_type = #tpu.core_type<tc>, window_params = [{transform_indices = @transform_0, window_bounds = array<i64: 16, 128>}, {pipeline_mode = #tpu.pipeline_mode<synchronous>, transform_indices = @transform_1, window_bounds = array<i64: 128, 256>}, {pipeline_mode = #tpu.pipeline_mode<synchronous>, transform_indices = @transform_2, window_bounds = array<i64: 1, 256>}, {pipeline_mode = #tpu.pipeline_mode<synchronous>, transform_indices = @transform_3, window_bounds = array<i64: 256, 256>}, {pipeline_mode = #tpu.pipeline_mode<synchronous>, transform_indices = @transform_4, window_bounds = array<i64: 1, 256>}, {pipeline_mode = #tpu.pipeline_mode<synchronous>, transform_indices = @transform_5, window_bounds = array<i64: 256, 256>}, {pipeline_mode = #tpu.pipeline_mode<synchronous>, transform_indices = @transform_6, window_bounds = array<i64: 1, 256>}, {pipeline_mode = #tpu.pipeline_mode<synchronous>, transform_indices = @transform_7, window_bounds = array<i64: 256, 512>}, {pipeline_mode = #tpu.pipeline_mode<synchronous>, transform_indices = @transform_8, window_bounds = array<i64: 1, 512>}, {transform_indices = @transform_9, window_bounds = array<i64: 16, 512>}]} {
    %c0 = arith.constant 0 : index
    %c0_0 = arith.constant 0 : index
    %0 = vector.load %arg1[%c0, %c0_0] : memref<16x128xbf16, #tpu.memory_space<vmem>>, vector<16x128xbf16>
    %c0_1 = arith.constant 0 : index
    %c0_2 = arith.constant 0 : index
    %1 = vector.load %arg2[%c0_1, %c0_2] : memref<128x256xbf16, #tpu.memory_space<vmem>>, vector<128x256xbf16>
    %c0_3 = arith.constant 0 : index
    %c0_4 = arith.constant 0 : index
    %2 = vector.load %arg3[%c0_3, %c0_4] : memref<1x256xf32, #tpu.memory_space<vmem>>, vector<1x256xf32>
    %c0_5 = arith.constant 0 : index
    %c0_6 = arith.constant 0 : index
    %3 = vector.load %arg4[%c0_5, %c0_6] : memref<256x256xbf16, #tpu.memory_space<vmem>>, vector<256x256xbf16>
    %c0_7 = arith.constant 0 : index
    %c0_8 = arith.constant 0 : index
    %4 = vector.load %arg5[%c0_7, %c0_8] : memref<1x256xf32, #tpu.memory_space<vmem>>, vector<1x256xf32>
    %c0_9 = arith.constant 0 : index
    %c0_10 = arith.constant 0 : index
    %5 = vector.load %arg6[%c0_9, %c0_10] : memref<256x256xbf16, #tpu.memory_space<vmem>>, vector<256x256xbf16>
    %c0_11 = arith.constant 0 : index
    %c0_12 = arith.constant 0 : index
    %6 = vector.load %arg7[%c0_11, %c0_12] : memref<1x256xf32, #tpu.memory_space<vmem>>, vector<1x256xf32>
    %c0_13 = arith.constant 0 : index
    %c0_14 = arith.constant 0 : index
    %7 = vector.load %arg8[%c0_13, %c0_14] : memref<256x512xbf16, #tpu.memory_space<vmem>>, vector<256x512xbf16>
    %c0_15 = arith.constant 0 : index
    %c0_16 = arith.constant 0 : index
    %8 = vector.load %arg9[%c0_15, %c0_16] : memref<1x512xf32, #tpu.memory_space<vmem>>, vector<1x512xf32>
    %cst = arith.constant dense<0.000000e+00> : vector<16x256xf32>
    %9 = tpu.matmul %0, %1, %cst {dimension_numbers = #tpu.dot_dimension_numbers<[1], [0], [0], [1], [0, 0, 1, 1], [], []>} : vector<16x128xbf16>, vector<128x256xbf16>, vector<16x256xf32> -> vector<16x256xf32>
    %10 = vector.broadcast %2 : vector<1x256xf32> to vector<16x256xf32>
    %11 = arith.addf %9, %10 : vector<16x256xf32>
    %cst_17 = arith.constant 0.000000e+00 : f32
    %12 = vector.broadcast %cst_17 : f32 to vector<16x256xf32>
    %13 = arith.maximumf %11, %12 : vector<16x256xf32>
    %14 = arith.truncf %13 : vector<16x256xf32> to vector<16x256xbf16>
    %cst_18 = arith.constant dense<0.000000e+00> : vector<16x256xf32>
    %15 = tpu.matmul %14, %3, %cst_18 {dimension_numbers = #tpu.dot_dimension_numbers<[1], [0], [0], [1], [0, 0, 1, 1], [], []>} : vector<16x256xbf16>, vector<256x256xbf16>, vector<16x256xf32> -> vector<16x256xf32>
    %16 = vector.broadcast %4 : vector<1x256xf32> to vector<16x256xf32>
    %17 = arith.addf %15, %16 : vector<16x256xf32>
    %cst_19 = arith.constant 0.000000e+00 : f32
    %18 = vector.broadcast %cst_19 : f32 to vector<16x256xf32>
    %19 = arith.maximumf %17, %18 : vector<16x256xf32>
    %20 = arith.truncf %19 : vector<16x256xf32> to vector<16x256xbf16>
    %cst_20 = arith.constant dense<0.000000e+00> : vector<16x256xf32>
    %21 = tpu.matmul %20, %5, %cst_20 {dimension_numbers = #tpu.dot_dimension_numbers<[1], [0], [0], [1], [0, 0, 1, 1], [], []>} : vector<16x256xbf16>, vector<256x256xbf16>, vector<16x256xf32> -> vector<16x256xf32>
    %22 = vector.broadcast %6 : vector<1x256xf32> to vector<16x256xf32>
    %23 = arith.addf %21, %22 : vector<16x256xf32>
    %cst_21 = arith.constant 0.000000e+00 : f32
    %24 = vector.broadcast %cst_21 : f32 to vector<16x256xf32>
    %25 = arith.maximumf %23, %24 : vector<16x256xf32>
    %26 = arith.truncf %25 : vector<16x256xf32> to vector<16x256xbf16>
    %cst_22 = arith.constant dense<0.000000e+00> : vector<16x512xf32>
    %27 = tpu.matmul %26, %7, %cst_22 {dimension_numbers = #tpu.dot_dimension_numbers<[1], [0], [0], [1], [0, 0, 1, 1], [], []>} : vector<16x256xbf16>, vector<256x512xbf16>, vector<16x512xf32> -> vector<16x512xf32>
    %28 = vector.broadcast %8 : vector<1x512xf32> to vector<16x512xf32>
    %29 = arith.addf %27, %28 : vector<16x512xf32>
    %c0_23 = arith.constant 0 : index
    %c0_24 = arith.constant 0 : index
    %30 = vector.load %arg10[%c0_23, %c0_24] : memref<16x512xf32, #tpu.memory_space<vmem>>, vector<16x512xf32>
    tpu.vector_store %arg10[%c0_23, %c0_24], %29 {strides = array<i32>} : memref<16x512xf32, #tpu.memory_space<vmem>>, vector<16x512xf32>,
    return
  }
  func.func @transform_0(%arg0: i32) -> (i32, i32) {
    %c0_i32 = arith.constant 0 : i32
    %c0_i32_0 = arith.constant 0 : i32
    return %arg0, %c0_i32 : i32, i32
  }
  func.func @transform_1(%arg0: i32) -> (i32, i32) {
    %c0_i32 = arith.constant 0 : i32
    %c0_i32_0 = arith.constant 0 : i32
    %c0_i32_1 = arith.constant 0 : i32
    return %c0_i32, %c0_i32_0 : i32, i32
  }
  func.func @transform_2(%arg0: i32) -> (i32, i32) {
    %c0_i32 = arith.constant 0 : i32
    %c0_i32_0 = arith.constant 0 : i32
    %c0_i32_1 = arith.constant 0 : i32
    return %c0_i32, %c0_i32_0 : i32, i32
  }
  func.func @transform_3(%arg0: i32) -> (i32, i32) {
    %c0_i32 = arith.constant 0 : i32
    %c0_i32_0 = arith.constant 0 : i32
    %c0_i32_1 = arith.constant 0 : i32
    return %c0_i32, %c0_i32_0 : i32, i32
  }
  func.func @transform_4(%arg0: i32) -> (i32, i32) {
    %c0_i32 = arith.constant 0 : i32
    %c0_i32_0 = arith.constant 0 : i32
    %c0_i32_1 = arith.constant 0 : i32
    return %c0_i32, %c0_i32_0 : i32, i32
  }
  func.func @transform_5(%arg0: i32) -> (i32, i32) {
    %c0_i32 = arith.constant 0 : i32
    %c0_i32_0 = arith.constant 0 : i32
    %c0_i32_1 = arith.constant 0 : i32
    return %c0_i32, %c0_i32_0 : i32, i32
  }
  func.func @transform_6(%arg0: i32) -> (i32, i32) {
    %c0_i32 = arith.constant 0 : i32
    %c0_i32_0 = arith.constant 0 : i32
    %c0_i32_1 = arith.constant 0 : i32
    return %c0_i32, %c0_i32_0 : i32, i32
  }
  func.func @transform_7(%arg0: i32) -> (i32, i32) {
    %c0_i32 = arith.constant 0 : i32
    %c0_i32_0 = arith.constant 0 : i32
    %c0_i32_1 = arith.constant 0 : i32
    return %c0_i32, %c0_i32_0 : i32, i32
  }
  func.func @transform_8(%arg0: i32) -> (i32, i32) {
    %c0_i32 = arith.constant 0 : i32
    %c0_i32_0 = arith.constant 0 : i32
    %c0_i32_1 = arith.constant 0 : i32
    return %c0_i32, %c0_i32_0 : i32, i32
  }
  func.func @transform_9(%arg0: i32) -> (i32, i32) {
    %c0_i32 = arith.constant 0 : i32
    %c0_i32_0 = arith.constant 0 : i32
    return %arg0, %c0_i32 : i32, i32
  }
}

</mosaic_0001>

<llo_original>
// kernel: tpu_custom_call.1
$region0: #{tpu_custom_call.1}
  #allocation0 [shape = 'u32[]', space=smem, size = 0x4, offset = 0x4, fixed_abs, tag = 'smem constant byte address 0x4 - core index']
  #allocation1 [shape = 'u32[144,128]{1,0:T(1,128)}', space=vmem, size = 0x12000, scoped, tag = 'internal scratch']
  %s0 = inlined_call_operand.hbm [shape: bf16[16,128], index: 0, kind: input, shape index: {}]
  %s1 = inlined_call_operand.hbm [shape: bf16[128,256], index: 1, kind: input, shape index: {}]
  %s2 = inlined_call_operand.vmem [shape: f32[1,256], index: 2, kind: input, shape index: {}]
  %s3 = inlined_call_operand.hbm [shape: bf16[256,256], index: 3, kind: input, shape index: {}]
  %s4 = inlined_call_operand.vmem [shape: f32[1,256], index: 4, kind: input, shape index: {}]
  %s5 = inlined_call_operand.hbm [shape: bf16[256,256], index: 5, kind: input, shape index: {}]
  %s6 = inlined_call_operand.vmem [shape: f32[1,256], index: 6, kind: input, shape index: {}]
  %s7 = inlined_call_operand.hbm [shape: bf16[256,512], index: 7, kind: input, shape index: {}]
  %s8 = inlined_call_operand.vmem [shape: f32[1,512], index: 8, kind: input, shape index: {}]
  %s9 = inlined_call_operand.hbm [shape: f32[16,512], index: 9, kind: output, shape index: {}]
  %s10 = sld [smem:[#allocation0]]
  $region66: #{tpu_custom_call.1} parent=0
    _
  %s12 = ssub.s32 1, %s10
  %s13 = scalar_select 0, %s12, %s10
  $region1: #{tpu_custom_call.1} parent=0
    #allocation2 [shape = 'u8[4096]{0}', space=vmem, size = 0x1000, scoped, tag = 'input window, operand 0, single buffered']
    #allocation3 [shape = 's32[1]{0}', space=sflag, size = 0x4, scoped, tag = 'scoped memory for tpu_custom_call.1']
    #allocation4 [shape = 's32[1]{0}', space=sflag, size = 0x4, scoped, tag = 'scoped memory for tpu_custom_call.1']
    #allocation5 [shape = 'u8[65536]{0}', space=vmem, size = 0x10000, scoped, tag = 'input window, operand 1, single buffered']
    #allocation6 [shape = 's32[1]{0}', space=sflag, size = 0x4, scoped, tag = 'scoped memory for tpu_custom_call.1']
    #allocation7 [shape = 'u8[131072]{0}', space=vmem, size = 0x20000, scoped, tag = 'input window, operand 3, single buffered']
    #allocation8 [shape = 'u8[131072]{0}', space=vmem, size = 0x20000, scoped, tag = 'input window, operand 5, single buffered']
    #allocation9 [shape = 's32[1]{0}', space=sflag, size = 0x4, scoped, tag = 'scoped memory for tpu_custom_call.1']
    #allocation10 [shape = 'u8[262144]{0}', space=vmem, size = 0x40000, scoped, tag = 'input window, operand 7, single buffered']
    #allocation11 [shape = 'u8[32768]{0}', space=vmem, size = 0x8000, scoped, tag = 'output window, operand 0, single buffered']
    %14 = vsyncpa [#allocation3], 0
    %15 = vsyncpa [#allocation6], 0
    %16 = vsyncpa [#allocation9], 0
    %17 = vsyncpa [#allocation4], 0
    // Predicated region
    $region2: #{tpu_custom_call.1} parent=1 // pred_check
      _
    $region3: #{tpu_custom_call.1} parent=1 // pred_check_branch
      %19 = sbr.rel (0) target = $region5
    $region4: #{tpu_custom_call.1} parent=1 // pred_region
      %s21 = ssub.s32 128, 128
      %22 = vsyncadd [#allocation3], %s21
      %s23 = sshll.u32 [#allocation2], 4
      %s24 = int_to_ptr.vmem [resolvable:$true] %s23
      %29 = dma.hbm_to_vmem [thread:$0]  %s0, 128, %s24, [#allocation3], 64, 64, 4
    $region5: #{tpu_custom_call.1} parent=1 // pred_fallthru
      _
    // Predicated region
    $region6: #{tpu_custom_call.1} parent=1 // pred_check
      _
    $region7: #{tpu_custom_call.1} parent=1 // pred_check_branch
      %31 = sbr.rel (0) target = $region9
    $region8: #{tpu_custom_call.1} parent=1 // pred_region
      %s33 = ssub.s32 2048, 2048
      %34 = vsyncadd [#allocation6], %s33
      %s35 = sshll.u32 [#allocation5], 4
      %s36 = int_to_ptr.vmem [resolvable:$true] %s35
      %41 = dma.hbm_to_vmem [thread:$0]  %s1, 2048, %s36, [#allocation6], 128, 128, 8
    $region9: #{tpu_custom_call.1} parent=1 // pred_fallthru
      _
    // Predicated region
    $region10: #{tpu_custom_call.1} parent=1 // pred_check
      _
    $region11: #{tpu_custom_call.1} parent=1 // pred_check_branch
      %43 = sbr.rel (0) target = $region13
    $region12: #{tpu_custom_call.1} parent=1 // pred_region
      _
    $region13: #{tpu_custom_call.1} parent=1 // pred_fallthru
      _
    // Predicated region
    $region14: #{tpu_custom_call.1} parent=1 // pred_check
      _
    $region15: #{tpu_custom_call.1} parent=1 // pred_check_branch
      %45 = sbr.rel (0) target = $region17
    $region16: #{tpu_custom_call.1} parent=1 // pred_region
      %s47 = ssub.s32 4096, 4096
      %48 = vsyncadd [#allocation6], %s47
      %s49 = sshll.u32 [#allocation7], 4
      %s50 = int_to_ptr.vmem [resolvable:$true] %s49
      %55 = dma.hbm_to_vmem [thread:$0]  %s3, 4096, %s50, [#allocation6], 128, 128, 8
    $region17: #{tpu_custom_call.1} parent=1 // pred_fallthru
      _
    // Predicated region
    $region18: #{tpu_custom_call.1} parent=1 // pred_check
      _
    $region19: #{tpu_custom_call.1} parent=1 // pred_check_branch
      %57 = sbr.rel (0) target = $region21
    $region20: #{tpu_custom_call.1} parent=1 // pred_region
      _
    $region21: #{tpu_custom_call.1} parent=1 // pred_fallthru
      _
    // Predicated region
    $region22: #{tpu_custom_call.1} parent=1 // pred_check
      _
    $region23: #{tpu_custom_call.1} parent=1 // pred_check_branch
      %59 = sbr.rel (0) target = $region25
    $region24: #{tpu_custom_call.1} parent=1 // pred_region
      %s61 = ssub.s32 4096, 4096
      %62 = vsyncadd [#allocation9], %s61
      %s63 = sshll.u32 [#allocation8], 4
      %s64 = int_to_ptr.vmem [resolvable:$true] %s63
      %69 = dma.hbm_to_vmem [thread:$0]  %s5, 4096, %s64, [#allocation9], 128, 128, 8
    $region25: #{tpu_custom_call.1} parent=1 // pred_fallthru
      _
    // Predicated region
    $region26: #{tpu_custom_call.1} parent=1 // pred_check
      _
    $region27: #{tpu_custom_call.1} parent=1 // pred_check_branch
      %71 = sbr.rel (0) target = $region29
    $region28: #{tpu_custom_call.1} parent=1 // pred_region
      _
    $region29: #{tpu_custom_call.1} parent=1 // pred_fallthru
      _
    // Predicated region
    $region30: #{tpu_custom_call.1} parent=1 // pred_check
      _
    $region31: #{tpu_custom_call.1} parent=1 // pred_check_branch
      %73 = sbr.rel (0) target = $region33
    $region32: #{tpu_custom_call.1} parent=1 // pred_region
      %s75 = ssub.s32 8192, 8192
      %76 = vsyncadd [#allocation9], %s75
      %s77 = sshll.u32 [#allocation10], 4
      %s78 = int_to_ptr.vmem [resolvable:$true] %s77
      %83 = dma.hbm_to_vmem [thread:$0]  %s7, 8192, %s78, [#allocation9], 256, 256, 16
    $region33: #{tpu_custom_call.1} parent=1 // pred_fallthru
      _
    // Predicated region
    $region34: #{tpu_custom_call.1} parent=1 // pred_check
      _
    $region35: #{tpu_custom_call.1} parent=1 // pred_check_branch
      %85 = sbr.rel (0) target = $region37
    $region36: #{tpu_custom_call.1} parent=1 // pred_region
      _
    $region37: #{tpu_custom_call.1} parent=1 // pred_fallthru
      _
    // Predicated region
    $region38: #{tpu_custom_call.1} parent=1 // pred_check
      _
    $region39: #{tpu_custom_call.1} parent=1 // pred_check_branch
      %87 = sbr.rel (0) target = $region41
    $region40: #{tpu_custom_call.1} parent=1 // pred_region
      %88 = dma.done [#allocation3], 128
    $region41: #{tpu_custom_call.1} parent=1 // pred_fallthru
      _
    // Predicated region
    $region42: #{tpu_custom_call.1} parent=1 // pred_check
      _
    $region43: #{tpu_custom_call.1} parent=1 // pred_check_branch
      %90 = sbr.rel (0) target = $region45
    $region44: #{tpu_custom_call.1} parent=1 // pred_region
      %91 = dma.done [#allocation6], 2048
    $region45: #{tpu_custom_call.1} parent=1 // pred_fallthru
      _
    // Predicated region
    $region46: #{tpu_custom_call.1} parent=1 // pred_check
      _
    $region47: #{tpu_custom_call.1} parent=1 // pred_check_branch
      %93 = sbr.rel (0) target = $region49
    $region48: #{tpu_custom_call.1} parent=1 // pred_region
      %94 = dma.done [#allocation6], 4096
    $region49: #{tpu_custom_call.1} parent=1 // pred_fallthru
      _
    // Predicated region
    $region50: #{tpu_custom_call.1} parent=1 // pred_check
      _
    $region51: #{tpu_custom_call.1} parent=1 // pred_check_branch
      %96 = sbr.rel (0) target = $region53
    $region52: #{tpu_custom_call.1} parent=1 // pred_region
      %97 = dma.done [#allocation9], 4096
    $region53: #{tpu_custom_call.1} parent=1 // pred_fallthru
      _
    // Predicated region
    $region54: #{tpu_custom_call.1} parent=1 // pred_check
      _
    $region55: #{tpu_custom_call.1} parent=1 // pred_check_branch
      %99 = sbr.rel (0) target = $region57
    $region56: #{tpu_custom_call.1} parent=1 // pred_region
      %100 = dma.done [#allocation9], 8192
    $region57: #{tpu_custom_call.1} parent=1 // pred_fallthru
      _
    %v102 = vld [vmem:[#allocation2] sm:$0xf]
    %v103 = vld [vmem:[#allocation2 + $0x4] sm:$0xf]
    %v104 = vld [vmem:[#allocation5] sm:$0xff]
    %v105 = vld [vmem:[#allocation5 + $0x8] sm:$0xff]
    %v106 = vld [vmem:[#allocation5 + $0x10] sm:$0xff]
    %v107 = vld [vmem:[#allocation5 + $0x18] sm:$0xff]
    %v108 = vld [vmem:[#allocation5 + $0x20] sm:$0xff]
    %v109 = vld [vmem:[#allocation5 + $0x28] sm:$0xff]
    %v110 = vld [vmem:[#allocation5 + $0x30] sm:$0xff]
    %v111 = vld [vmem:[#allocation5 + $0x38] sm:$0xff]
    %v112 = vld [vmem:[#allocation5 + $0x40] sm:$0xff]
    %v113 = vld [vmem:[#allocation5 + $0x48] sm:$0xff]
    %v114 = vld [vmem:[#allocation5 + $0x50] sm:$0xff]
    %v115 = vld [vmem:[#allocation5 + $0x58] sm:$0xff]
    %v116 = vld [vmem:[#allocation5 + $0x60] sm:$0xff]
    %v117 = vld [vmem:[#allocation5 + $0x68] sm:$0xff]
    %v118 = vld [vmem:[#allocation5 + $0x70] sm:$0xff]
    %v119 = vld [vmem:[#allocation5 + $0x78] sm:$0xff]
    %v120 = vld [vmem:[%s2] sm:$0x3]
    %v121 = vld [vmem:[#allocation7] sm:$0xff]
    %v122 = vld [vmem:[#allocation7 + $0x8] sm:$0xff]
    %v123 = vld [vmem:[#allocation7 + $0x10] sm:$0xff]
    %v124 = vld [vmem:[#allocation7 + $0x18] sm:$0xff]
    %v125 = vld [vmem:[#allocation7 + $0x20] sm:$0xff]
    %v126 = vld [vmem:[#allocation7 + $0x28] sm:$0xff]
    %v127 = vld [vmem:[#allocation7 + $0x30] sm:$0xff]
    %v128 = vld [vmem:[#allocation7 + $0x38] sm:$0xff]
    %v129 = vld [vmem:[#allocation7 + $0x40] sm:$0xff]
    %v130 = vld [vmem:[#allocation7 + $0x48] sm:$0xff]
    %v131 = vld [vmem:[#allocation7 + $0x50] sm:$0xff]
    %v132 = vld [vmem:[#allocation7 + $0x58] sm:$0xff]
    %v133 = vld [vmem:[#allocation7 + $0x60] sm:$0xff]
    %v134 = vld [vmem:[#allocation7 + $0x68] sm:$0xff]
    %v135 = vld [vmem:[#allocation7 + $0x70] sm:$0xff]
    %v136 = vld [vmem:[#allocation7 + $0x78] sm:$0xff]
    %v137 = vld [vmem:[#allocation7 + $0x80] sm:$0xff]
    %v138 = vld [vmem:[#allocation7 + $0x88] sm:$0xff]
    %v139 = vld [vmem:[#allocation7 + $0x90] sm:$0xff]
    %v140 = vld [vmem:[#allocation7 + $0x98] sm:$0xff]
    %v141 = vld [vmem:[#allocation7 + $0xa0] sm:$0xff]
    %v142 = vld [vmem:[#allocation7 + $0xa8] sm:$0xff]
    %v143 = vld [vmem:[#allocation7 + $0xb0] sm:$0xff]
    %v144 = vld [vmem:[#allocation7 + $0xb8] sm:$0xff]
    %v145 = vld [vmem:[#allocation7 + $0xc0] sm:$0xff]
    %v146 = vld [vmem:[#allocation7 + $0xc8] sm:$0xff]
    %v147 = vld [vmem:[#allocation7 + $0xd0] sm:$0xff]
    %v148 = vld [vmem:[#allocation7 + $0xd8] sm:$0xff]
    %v149 = vld [vmem:[#allocation7 + $0xe0] sm:$0xff]
    %v150 = vld [vmem:[#allocation7 + $0xe8] sm:$0xff]
    %v151 = vld [vmem:[#allocation7 + $0xf0] sm:$0xff]
    %v152 = vld [vmem:[#allocation7 + $0xf8] sm:$0xff]
    %v153 = vld [vmem:[%s4] sm:$0x3]
    %v154 = vld [vmem:[#allocation8] sm:$0xff]
    %v155 = vld [vmem:[#allocation8 + $0x8] sm:$0xff]
    %v156 = vld [vmem:[#allocation8 + $0x10] sm:$0xff]
    %v157 = vld [vmem:[#allocation8 + $0x18] sm:$0xff]
    %v158 = vld [vmem:[#allocation8 + $0x20] sm:$0xff]
    %v159 = vld [vmem:[#allocation8 + $0x28] sm:$0xff]
    %v160 = vld [vmem:[#allocation8 + $0x30] sm:$0xff]
    %v161 = vld [vmem:[#allocation8 + $0x38] sm:$0xff]
    %v162 = vld [vmem:[#allocation8 + $0x40] sm:$0xff]
    %v163 = vld [vmem:[#allocation8 + $0x48] sm:$0xff]
    %v164 = vld [vmem:[#allocation8 + $0x50] sm:$0xff]
    %v165 = vld [vmem:[#allocation8 + $0x58] sm:$0xff]
    %v166 = vld [vmem:[#allocation8 + $0x60] sm:$0xff]
    %v167 = vld [vmem:[#allocation8 + $0x68] sm:$0xff]
    %v168 = vld [vmem:[#allocation8 + $0x70] sm:$0xff]
    %v169 = vld [vmem:[#allocation8 + $0x78] sm:$0xff]
    %v170 = vld [vmem:[#allocation8 + $0x80] sm:$0xff]
    %v171 = vld [vmem:[#allocation8 + $0x88] sm:$0xff]
    %v172 = vld [vmem:[#allocation8 + $0x90] sm:$0xff]
    %v173 = vld [vmem:[#allocation8 + $0x98] sm:$0xff]
    %v174 = vld [vmem:[#allocation8 + $0xa0] sm:$0xff]
    %v175 = vld [vmem:[#allocation8 + $0xa8] sm:$0xff]
    %v176 = vld [vmem:[#allocation8 + $0xb0] sm:$0xff]
    %v177 = vld [vmem:[#allocation8 + $0xb8] sm:$0xff]
    %v178 = vld [vmem:[#allocation8 + $0xc0] sm:$0xff]
    %v179 = vld [vmem:[#allocation8 + $0xc8] sm:$0xff]
    %v180 = vld [vmem:[#allocation8 + $0xd0] sm:$0xff]
    %v181 = vld [vmem:[#allocation8 + $0xd8] sm:$0xff]
    %v182 = vld [vmem:[#allocation8 + $0xe0] sm:$0xff]
    %v183 = vld [vmem:[#allocation8 + $0xe8] sm:$0xff]
    %v184 = vld [vmem:[#allocation8 + $0xf0] sm:$0xff]
    %v185 = vld [vmem:[#allocation8 + $0xf8] sm:$0xff]
    %v186 = vld [vmem:[%s6] sm:$0x3]
    %v187 = vld [vmem:[#allocation10] sm:$0xff]
    %v188 = vld [vmem:[#allocation10 + $0x8] sm:$0xff]
    %v189 = vld [vmem:[#allocation10 + $0x10] sm:$0xff]
    %v190 = vld [vmem:[#allocation10 + $0x18] sm:$0xff]
    %v191 = vld [vmem:[#allocation10 + $0x20] sm:$0xff]
    %v192 = vld [vmem:[#allocation10 + $0x28] sm:$0xff]
    %v193 = vld [vmem:[#allocation10 + $0x30] sm:$0xff]
    %v194 = vld [vmem:[#allocation10 + $0x38] sm:$0xff]
    %v195 = vld [vmem:[#allocation10 + $0x40] sm:$0xff]
    %v196 = vld [vmem:[#allocation10 + $0x48] sm:$0xff]
    %v197 = vld [vmem:[#allocation10 + $0x50] sm:$0xff]
    %v198 = vld [vmem:[#allocation10 + $0x58] sm:$0xff]
    %v199 = vld [vmem:[#allocation10 + $0x60] sm:$0xff]
    %v200 = vld [vmem:[#allocation10 + $0x68] sm:$0xff]
    %v201 = vld [vmem:[#allocation10 + $0x70] sm:$0xff]
    %v202 = vld [vmem:[#allocation10 + $0x78] sm:$0xff]
    %v203 = vld [vmem:[#allocation10 + $0x80] sm:$0xff]
    %v204 = vld [vmem:[#allocation10 + $0x88] sm:$0xff]
    %v205 = vld [vmem:[#allocation10 + $0x90] sm:$0xff]
    %v206 = vld [vmem:[#allocation10 + $0x98] sm:$0xff]
    %v207 = vld [vmem:[#allocation10 + $0xa0] sm:$0xff]
    %v208 = vld [vmem:[#allocation10 + $0xa8] sm:$0xff]
    %v209 = vld [vmem:[#allocation10 + $0xb0] sm:$0xff]
    %v210 = vld [vmem:[#allocation10 + $0xb8] sm:$0xff]
    %v211 = vld [vmem:[#allocation10 + $0xc0] sm:$0xff]
    %v212 = vld [vmem:[#allocation10 + $0xc8] sm:$0xff]
    %v213 = vld [vmem:[#allocation10 + $0xd0] sm:$0xff]
    %v214 = vld [vmem:[#allocation10 + $0xd8] sm:$0xff]
    %v215 = vld [vmem:[#allocation10 + $0xe0] sm:$0xff]
    %v216 = vld [vmem:[#allocation10 + $0xe8] sm:$0xff]
    %v217 = vld [vmem:[#allocation10 + $0xf0] sm:$0xff]
    %v218 = vld [vmem:[#allocation10 + $0xf8] sm:$0xff]
    %v219 = vld [vmem:[#allocation10 + $0x100] sm:$0xff]
    %v220 = vld [vmem:[#allocation10 + $0x108] sm:$0xff]
    %v221 = vld [vmem:[#allocation10 + $0x110] sm:$0xff]
    %v222 = vld [vmem:[#allocation10 + $0x118] sm:$0xff]
    %v223 = vld [vmem:[#allocation10 + $0x120] sm:$0xff]
    %v224 = vld [vmem:[#allocation10 + $0x128] sm:$0xff]
    %v225 = vld [vmem:[#allocation10 + $0x130] sm:$0xff]
    %v226 = vld [vmem:[#allocation10 + $0x138] sm:$0xff]
    %v227 = vld [vmem:[#allocation10 + $0x140] sm:$0xff]
    %v228 = vld [vmem:[#allocation10 + $0x148] sm:$0xff]
    %v229 = vld [vmem:[#allocation10 + $0x150] sm:$0xff]
    %v230 = vld [vmem:[#allocation10 + $0x158] sm:$0xff]
    %v231 = vld [vmem:[#allocation10 + $0x160] sm:$0xff]
    %v232 = vld [vmem:[#allocation10 + $0x168] sm:$0xff]
    %v233 = vld [vmem:[#allocation10 + $0x170] sm:$0xff]
    %v234 = vld [vmem:[#allocation10 + $0x178] sm:$0xff]
    %v235 = vld [vmem:[#allocation10 + $0x180] sm:$0xff]
    %v236 = vld [vmem:[#allocation10 + $0x188] sm:$0xff]
    %v237 = vld [vmem:[#allocation10 + $0x190] sm:$0xff]
    %v238 = vld [vmem:[#allocation10 + $0x198] sm:$0xff]
    %v239 = vld [vmem:[#allocation10 + $0x1a0] sm:$0xff]
    %v240 = vld [vmem:[#allocation10 + $0x1a8] sm:$0xff]
    %v241 = vld [vmem:[#allocation10 + $0x1b0] sm:$0xff]
    %v242 = vld [vmem:[#allocation10 + $0x1b8] sm:$0xff]
    %v243 = vld [vmem:[#allocation10 + $0x1c0] sm:$0xff]
    %v244 = vld [vmem:[#allocation10 + $0x1c8] sm:$0xff]
    %v245 = vld [vmem:[#allocation10 + $0x1d0] sm:$0xff]
    %v246 = vld [vmem:[#allocation10 + $0x1d8] sm:$0xff]
    %v247 = vld [vmem:[#allocation10 + $0x1e0] sm:$0xff]
    %v248 = vld [vmem:[#allocation10 + $0x1e8] sm:$0xff]
    %v249 = vld [vmem:[#allocation10 + $0x1f0] sm:$0xff]
    %v250 = vld [vmem:[#allocation10 + $0x1f8] sm:$0xff]
    %v251 = vld [vmem:[%s8] sm:$0xf]
    %v253 = vlaneseq
    %v254 = vshrl.u32 %v253, 7
    %v255 = vsub.s32 0, %v254
    %v256 = vrot.slane %v120, %v255
    %v257 = vlaneseq
    %v258 = vshrl.u32 %v257, 7
    %v259 = vsub.s32 1, %v258
    %v260 = vrot.slane %v120, %v259
    %v265 = vunpack.c.l.b16 %v102
    %v266 = vunpack.c.l.b16 %v103
    %v267 = vpack.c.b16 %v266, %v265
    %v285 = vunpack.c.l.b16 %v104
    %v286 = vunpack.c.h.b16 %v104
    %v287 = vunpack.c.l.b16 %v105
    %v288 = vunpack.c.h.b16 %v105
    %v289 = vunpack.c.l.b16 %v106
    %v290 = vunpack.c.h.b16 %v106
    %v291 = vunpack.c.l.b16 %v107
    %v292 = vunpack.c.h.b16 %v107
    %v293 = vunpack.c.l.b16 %v108
    %v294 = vunpack.c.h.b16 %v108
    %v295 = vunpack.c.l.b16 %v109
    %v296 = vunpack.c.h.b16 %v109
    %v297 = vunpack.c.l.b16 %v110
    %v298 = vunpack.c.h.b16 %v110
    %v299 = vunpack.c.l.b16 %v111
    %v300 = vunpack.c.h.b16 %v111
    %v301 = vunpack.c.l.b16 %v112
    %v302 = vunpack.c.h.b16 %v112
    %v303 = vunpack.c.l.b16 %v113
    %v304 = vunpack.c.h.b16 %v113
    %v305 = vunpack.c.l.b16 %v114
    %v306 = vunpack.c.h.b16 %v114
    %v307 = vunpack.c.l.b16 %v115
    %v308 = vunpack.c.h.b16 %v115
    %v309 = vunpack.c.l.b16 %v116
    %v310 = vunpack.c.h.b16 %v116
    %v311 = vunpack.c.l.b16 %v117
    %v312 = vunpack.c.h.b16 %v117
    %v313 = vunpack.c.l.b16 %v118
    %v314 = vunpack.c.h.b16 %v118
    %v315 = vunpack.c.l.b16 %v119
    %v316 = vunpack.c.h.b16 %v119
    %v317 = vpack.c.b16 %v287, %v285
    %v318 = vpack.c.b16 %v288, %v286
    %v319 = vpack.c.b16 %v291, %v289
    %v320 = vpack.c.b16 %v292, %v290
    %v321 = vpack.c.b16 %v295, %v293
    %v322 = vpack.c.b16 %v296, %v294
    %v323 = vpack.c.b16 %v299, %v297
    %v324 = vpack.c.b16 %v300, %v298
    %v325 = vpack.c.b16 %v303, %v301
    %v326 = vpack.c.b16 %v304, %v302
    %v327 = vpack.c.b16 %v307, %v305
    %v328 = vpack.c.b16 %v308, %v306
    %v329 = vpack.c.b16 %v311, %v309
    %v330 = vpack.c.b16 %v312, %v310
    %v331 = vpack.c.b16 %v315, %v313
    %v332 = vpack.c.b16 %v316, %v314
    %349 = vmatprep.subr.bf16.mxu0 %v318
    %350 = vmatpush1.bf16.msra.mxu0 %v317
    %351 = vmatprep.subr.bf16.mxu0 %v320
    %352 = vmatpush1.bf16.msra.mxu0 %v319
    %353 = vmatprep.subr.bf16.mxu0 %v322
    %354 = vmatpush1.bf16.msra.mxu0 %v321
    %355 = vmatprep.subr.bf16.mxu0 %v324
    %356 = vmatpush1.bf16.msra.mxu0 %v323
    %357 = vmatprep.subr.bf16.mxu0 %v326
    %358 = vmatpush1.bf16.msra.mxu0 %v325
    %359 = vmatprep.subr.bf16.mxu0 %v328
    %360 = vmatpush1.bf16.msra.mxu0 %v327
    %361 = vmatprep.subr.bf16.mxu0 %v330
    %362 = vmatpush1.bf16.msra.mxu0 %v329
    %363 = vmatprep.subr.bf16.mxu0 %v332
    %364 = vmatpush1.bf16.msra.mxu0 %v331
    %365 = vmatprep.subr.bf16.mxu0 0
    %366 = vmatpush1.bf16.msra.mxu0 0
    %367 = vmatprep.subr.bf16.mxu0 0
    %368 = vmatpush1.bf16.msra.mxu0 0
    %369 = vmatprep.subr.bf16.mxu0 0
    %370 = vmatpush1.bf16.msra.mxu0 0
    %371 = vmatprep.subr.bf16.mxu0 0
    %372 = vmatpush1.bf16.msra.mxu0 0
    %373 = vmatprep.subr.bf16.mxu0 0
    %374 = vmatpush1.bf16.msra.mxu0 0
    %375 = vmatprep.subr.bf16.mxu0 0
    %376 = vmatpush1.bf16.msra.mxu0 0
    %377 = vmatprep.subr.bf16.mxu0 0
    %378 = vmatpush1.bf16.msra.mxu0 0
    %379 = vmatprep.subr.bf16.mxu0 0
    %380 = vmatpush1.bf16.msra.mxu0 0
    %381 = vmatprep.mubr.bf16.mxu0 0
    %382 = vmatmul.mubr.bf16.gmra.mrb[0].mxu0 %v267
    %v383 = vpop.f32.mrb[0].mxu0
    %v384 = vadd.f32 %v256, %v383
    %v385 = vpop.f32.mrb[0].mxu0
    %v386 = vadd.f32 %v260, %v385
    %v387 = vpop.f32.mrb[0].mxu0
    %v388 = vadd.f32 %v256, %v387
    %v389 = vpop.f32.mrb[0].mxu0
    %v390 = vadd.f32 %v260, %v389
    %391 = vdwg.mxu0
    %v392 = vmax.f32 %v384, 0.0
    %v393 = vmax.f32 %v386, 0.0
    %v394 = vmax.f32 %v388, 0.0
    %v395 = vmax.f32 %v390, 0.0
    %v396 = vpack.c.bf16 %v394, %v392
    %v397 = vpack.c.bf16 %v395, %v393
    %v399 = vlaneseq
    %v400 = vshrl.u32 %v399, 7
    %v401 = vsub.s32 0, %v400
    %v402 = vrot.slane %v153, %v401
    %v403 = vlaneseq
    %v404 = vshrl.u32 %v403, 7
    %v405 = vsub.s32 1, %v404
    %v406 = vrot.slane %v153, %v405
    %v441 = vunpack.c.l.b16 %v121
    %v442 = vunpack.c.h.b16 %v121
    %v443 = vunpack.c.l.b16 %v122
    %v444 = vunpack.c.h.b16 %v122
    %v445 = vunpack.c.l.b16 %v123
    %v446 = vunpack.c.h.b16 %v123
    %v447 = vunpack.c.l.b16 %v124
    %v448 = vunpack.c.h.b16 %v124
    %v449 = vunpack.c.l.b16 %v125
    %v450 = vunpack.c.h.b16 %v125
    %v451 = vunpack.c.l.b16 %v126
    %v452 = vunpack.c.h.b16 %v126
    %v453 = vunpack.c.l.b16 %v127
    %v454 = vunpack.c.h.b16 %v127
    %v455 = vunpack.c.l.b16 %v128
    %v456 = vunpack.c.h.b16 %v128
    %v457 = vunpack.c.l.b16 %v129
    %v458 = vunpack.c.h.b16 %v129
    %v459 = vunpack.c.l.b16 %v130
    %v460 = vunpack.c.h.b16 %v130
    %v461 = vunpack.c.l.b16 %v131
    %v462 = vunpack.c.h.b16 %v131
    %v463 = vunpack.c.l.b16 %v132
    %v464 = vunpack.c.h.b16 %v132
    %v465 = vunpack.c.l.b16 %v133
    %v466 = vunpack.c.h.b16 %v133
    %v467 = vunpack.c.l.b16 %v134
    %v468 = vunpack.c.h.b16 %v134
    %v469 = vunpack.c.l.b16 %v135
    %v470 = vunpack.c.h.b16 %v135
    %v471 = vunpack.c.l.b16 %v136
    %v472 = vunpack.c.h.b16 %v136
    %v473 = vunpack.c.l.b16 %v137
    %v474 = vunpack.c.h.b16 %v137
    %v475 = vunpack.c.l.b16 %v138
    %v476 = vunpack.c.h.b16 %v138
    %v477 = vunpack.c.l.b16 %v139
    %v478 = vunpack.c.h.b16 %v139
    %v479 = vunpack.c.l.b16 %v140
    %v480 = vunpack.c.h.b16 %v140
    %v481 = vunpack.c.l.b16 %v141
    %v482 = vunpack.c.h.b16 %v141
    %v483 = vunpack.c.l.b16 %v142
    %v484 = vunpack.c.h.b16 %v142
    %v485 = vunpack.c.l.b16 %v143
    %v486 = vunpack.c.h.b16 %v143
    %v487 = vunpack.c.l.b16 %v144
    %v488 = vunpack.c.h.b16 %v144
    %v489 = vunpack.c.l.b16 %v145
    %v490 = vunpack.c.h.b16 %v145
    %v491 = vunpack.c.l.b16 %v146
    %v492 = vunpack.c.h.b16 %v146
    %v493 = vunpack.c.l.b16 %v147
    %v494 = vunpack.c.h.b16 %v147
    %v495 = vunpack.c.l.b16 %v148
    %v496 = vunpack.c.h.b16 %v148
    %v497 = vunpack.c.l.b16 %v149
    %v498 = vunpack.c.h.b16 %v149
    %v499 = vunpack.c.l.b16 %v150
    %v500 = vunpack.c.h.b16 %v150
    %v501 = vunpack.c.l.b16 %v151
    %v502 = vunpack.c.h.b16 %v151
    %v503 = vunpack.c.l.b16 %v152
    %v504 = vunpack.c.h.b16 %v152
    %v505 = vpack.c.b16 %v443, %v441
    %v506 = vpack.c.b16 %v444, %v442
    %v507 = vpack.c.b16 %v447, %v445
    %v508 = vpack.c.b16 %v448, %v446
    %v509 = vpack.c.b16 %v451, %v449
    %v510 = vpack.c.b16 %v452, %v450
    %v511 = vpack.c.b16 %v455, %v453
    %v512 = vpack.c.b16 %v456, %v454
    %v513 = vpack.c.b16 %v459, %v457
    %v514 = vpack.c.b16 %v460, %v458
    %v515 = vpack.c.b16 %v463, %v461
    %v516 = vpack.c.b16 %v464, %v462
    %v517 = vpack.c.b16 %v467, %v465
    %v518 = vpack.c.b16 %v468, %v466
    %v519 = vpack.c.b16 %v471, %v469
    %v520 = vpack.c.b16 %v472, %v470
    %v521 = vpack.c.b16 %v475, %v473
    %v522 = vpack.c.b16 %v476, %v474
    %v523 = vpack.c.b16 %v479, %v477
    %v524 = vpack.c.b16 %v480, %v478
    %v525 = vpack.c.b16 %v483, %v481
    %v526 = vpack.c.b16 %v484, %v482
    %v527 = vpack.c.b16 %v487, %v485
    %v528 = vpack.c.b16 %v488, %v486
    %v529 = vpack.c.b16 %v491, %v489
    %v530 = vpack.c.b16 %v492, %v490
    %v531 = vpack.c.b16 %v495, %v493
    %v532 = vpack.c.b16 %v496, %v494
    %v533 = vpack.c.b16 %v499, %v497
    %v534 = vpack.c.b16 %v500, %v498
    %v535 = vpack.c.b16 %v503, %v501
    %v536 = vpack.c.b16 %v504, %v502
    %569 = vmatprep.subr.bf16.mxu0 %v506
    %570 = vmatpush1.bf16.msra.mxu0 %v505
    %571 = vmatprep.subr.bf16.mxu0 %v508
    %572 = vmatpush1.bf16.msra.mxu0 %v507
    %573 = vmatprep.subr.bf16.mxu0 %v510
    %574 = vmatpush1.bf16.msra.mxu0 %v509
    %575 = vmatprep.subr.bf16.mxu0 %v512
    %576 = vmatpush1.bf16.msra.mxu0 %v511
    %577 = vmatprep.subr.bf16.mxu0 %v514
    %578 = vmatpush1.bf16.msra.mxu0 %v513
    %579 = vmatprep.subr.bf16.mxu0 %v516
    %580 = vmatpush1.bf16.msra.mxu0 %v515
    %581 = vmatprep.subr.bf16.mxu0 %v518
    %582 = vmatpush1.bf16.msra.mxu0 %v517
    %583 = vmatprep.subr.bf16.mxu0 %v520
    %584 = vmatpush1.bf16.msra.mxu0 %v519
    %585 = vmatprep.subr.bf16.mxu0 %v522
    %586 = vmatpush1.bf16.msra.mxu0 %v521
    %587 = vmatprep.subr.bf16.mxu0 %v524
    %588 = vmatpush1.bf16.msra.mxu0 %v523
    %589 = vmatprep.subr.bf16.mxu0 %v526
    %590 = vmatpush1.bf16.msra.mxu0 %v525
    %591 = vmatprep.subr.bf16.mxu0 %v528
    %592 = vmatpush1.bf16.msra.mxu0 %v527
    %593 = vmatprep.subr.bf16.mxu0 %v530
    %594 = vmatpush1.bf16.msra.mxu0 %v529
    %595 = vmatprep.subr.bf16.mxu0 %v532
    %596 = vmatpush1.bf16.msra.mxu0 %v531
    %597 = vmatprep.subr.bf16.mxu0 %v534
    %598 = vmatpush1.bf16.msra.mxu0 %v533
    %599 = vmatprep.subr.bf16.mxu0 %v536
    %600 = vmatpush1.bf16.msra.mxu0 %v535
    %601 = vmatprep.mubr.bf16.mxu0 %v397
    %602 = vmatmul.mubr.bf16.gmra.mrb[0].mxu0 %v396
    %v603 = vpop.f32.mrb[0].mxu0
    %v604 = vadd.f32 %v402, %v603
    %v605 = vpop.f32.mrb[0].mxu0
    %v606 = vadd.f32 %v406, %v605
    %v607 = vpop.f32.mrb[0].mxu0
    %v608 = vadd.f32 %v402, %v607
    %v609 = vpop.f32.mrb[0].mxu0
    %v610 = vadd.f32 %v406, %v609
    %611 = vdwg.mxu0
    %v612 = vmax.f32 %v604, 0.0
    %v613 = vmax.f32 %v606, 0.0
    %v614 = vmax.f32 %v608, 0.0
    %v615 = vmax.f32 %v610, 0.0
    %v616 = vpack.c.bf16 %v614, %v612
    %v617 = vpack.c.bf16 %v615, %v613
    %v619 = vlaneseq
    %v620 = vshrl.u32 %v619, 7
    %v621 = vsub.s32 0, %v620
    %v622 = vrot.slane %v186, %v621
    %v623 = vlaneseq
    %v624 = vshrl.u32 %v623, 7
    %v625 = vsub.s32 1, %v624
    %v626 = vrot.slane %v186, %v625
    %v661 = vunpack.c.l.b16 %v154
    %v662 = vunpack.c.h.b16 %v154
    %v663 = vunpack.c.l.b16 %v155
    %v664 = vunpack.c.h.b16 %v155
    %v665 = vunpack.c.l.b16 %v156
    %v666 = vunpack.c.h.b16 %v156
    %v667 = vunpack.c.l.b16 %v157
    %v668 = vunpack.c.h.b16 %v157
    %v669 = vunpack.c.l.b16 %v158
    %v670 = vunpack.c.h.b16 %v158
    %v671 = vunpack.c.l.b16 %v159
    %v672 = vunpack.c.h.b16 %v159
    %v673 = vunpack.c.l.b16 %v160
    %v674 = vunpack.c.h.b16 %v160
    %v675 = vunpack.c.l.b16 %v161
    %v676 = vunpack.c.h.b16 %v161
    %v677 = vunpack.c.l.b16 %v162
    %v678 = vunpack.c.h.b16 %v162
    %v679 = vunpack.c.l.b16 %v163
    %v680 = vunpack.c.h.b16 %v163
    %v681 = vunpack.c.l.b16 %v164
    %v682 = vunpack.c.h.b16 %v164
    %v683 = vunpack.c.l.b16 %v165
    %v684 = vunpack.c.h.b16 %v165
    %v685 = vunpack.c.l.b16 %v166
    %v686 = vunpack.c.h.b16 %v166
    %v687 = vunpack.c.l.b16 %v167
    %v688 = vunpack.c.h.b16 %v167
    %v689 = vunpack.c.l.b16 %v168
    %v690 = vunpack.c.h.b16 %v168
    %v691 = vunpack.c.l.b16 %v169
    %v692 = vunpack.c.h.b16 %v169
    %v693 = vunpack.c.l.b16 %v170
    %v694 = vunpack.c.h.b16 %v170
    %v695 = vunpack.c.l.b16 %v171
    %v696 = vunpack.c.h.b16 %v171
    %v697 = vunpack.c.l.b16 %v172
    %v698 = vunpack.c.h.b16 %v172
    %v699 = vunpack.c.l.b16 %v173
    %v700 = vunpack.c.h.b16 %v173
    %v701 = vunpack.c.l.b16 %v174
    %v702 = vunpack.c.h.b16 %v174
    %v703 = vunpack.c.l.b16 %v175
    %v704 = vunpack.c.h.b16 %v175
    %v705 = vunpack.c.l.b16 %v176
    %v706 = vunpack.c.h.b16 %v176
    %v707 = vunpack.c.l.b16 %v177
    %v708 = vunpack.c.h.b16 %v177
    %v709 = vunpack.c.l.b16 %v178
    %v710 = vunpack.c.h.b16 %v178
    %v711 = vunpack.c.l.b16 %v179
    %v712 = vunpack.c.h.b16 %v179
    %v713 = vunpack.c.l.b16 %v180
    %v714 = vunpack.c.h.b16 %v180
    %v715 = vunpack.c.l.b16 %v181
    %v716 = vunpack.c.h.b16 %v181
    %v717 = vunpack.c.l.b16 %v182
    %v718 = vunpack.c.h.b16 %v182
    %v719 = vunpack.c.l.b16 %v183
    %v720 = vunpack.c.h.b16 %v183
    %v721 = vunpack.c.l.b16 %v184
    %v722 = vunpack.c.h.b16 %v184
    %v723 = vunpack.c.l.b16 %v185
    %v724 = vunpack.c.h.b16 %v185
    %v725 = vpack.c.b16 %v663, %v661
    %v726 = vpack.c.b16 %v664, %v662
    %v727 = vpack.c.b16 %v667, %v665
    %v728 = vpack.c.b16 %v668, %v666
    %v729 = vpack.c.b16 %v671, %v669
    %v730 = vpack.c.b16 %v672, %v670
    %v731 = vpack.c.b16 %v675, %v673
    %v732 = vpack.c.b16 %v676, %v674
    %v733 = vpack.c.b16 %v679, %v677
    %v734 = vpack.c.b16 %v680, %v678
    %v735 = vpack.c.b16 %v683, %v681
    %v736 = vpack.c.b16 %v684, %v682
    %v737 = vpack.c.b16 %v687, %v685
    %v738 = vpack.c.b16 %v688, %v686
    %v739 = vpack.c.b16 %v691, %v689
    %v740 = vpack.c.b16 %v692, %v690
    %v741 = vpack.c.b16 %v695, %v693
    %v742 = vpack.c.b16 %v696, %v694
    %v743 = vpack.c.b16 %v699, %v697
    %v744 = vpack.c.b16 %v700, %v698
    %v745 = vpack.c.b16 %v703, %v701
    %v746 = vpack.c.b16 %v704, %v702
    %v747 = vpack.c.b16 %v707, %v705
    %v748 = vpack.c.b16 %v708, %v706
    %v749 = vpack.c.b16 %v711, %v709
    %v750 = vpack.c.b16 %v712, %v710
    %v751 = vpack.c.b16 %v715, %v713
    %v752 = vpack.c.b16 %v716, %v714
    %v753 = vpack.c.b16 %v719, %v717
    %v754 = vpack.c.b16 %v720, %v718
    %v755 = vpack.c.b16 %v723, %v721
    %v756 = vpack.c.b16 %v724, %v722
    %789 = vmatprep.subr.bf16.mxu0 %v726
    %790 = vmatpush1.bf16.msra.mxu0 %v725
    %791 = vmatprep.subr.bf16.mxu0 %v728
    %792 = vmatpush1.bf16.msra.mxu0 %v727
    %793 = vmatprep.subr.bf16.mxu0 %v730
    %794 = vmatpush1.bf16.msra.mxu0 %v729
    %795 = vmatprep.subr.bf16.mxu0 %v732
    %796 = vmatpush1.bf16.msra.mxu0 %v731
    %797 = vmatprep.subr.bf16.mxu0 %v734
    %798 = vmatpush1.bf16.msra.mxu0 %v733
    %799 = vmatprep.subr.bf16.mxu0 %v736
    %800 = vmatpush1.bf16.msra.mxu0 %v735
    %801 = vmatprep.subr.bf16.mxu0 %v738
    %802 = vmatpush1.bf16.msra.mxu0 %v737
    %803 = vmatprep.subr.bf16.mxu0 %v740
    %804 = vmatpush1.bf16.msra.mxu0 %v739
    %805 = vmatprep.subr.bf16.mxu0 %v742
    %806 = vmatpush1.bf16.msra.mxu0 %v741
    %807 = vmatprep.subr.bf16.mxu0 %v744
    %808 = vmatpush1.bf16.msra.mxu0 %v743
    %809 = vmatprep.subr.bf16.mxu0 %v746
    %810 = vmatpush1.bf16.msra.mxu0 %v745
    %811 = vmatprep.subr.bf16.mxu0 %v748
    %812 = vmatpush1.bf16.msra.mxu0 %v747
    %813 = vmatprep.subr.bf16.mxu0 %v750
    %814 = vmatpush1.bf16.msra.mxu0 %v749
    %815 = vmatprep.subr.bf16.mxu0 %v752
    %816 = vmatpush1.bf16.msra.mxu0 %v751
    %817 = vmatprep.subr.bf16.mxu0 %v754
    %818 = vmatpush1.bf16.msra.mxu0 %v753
    %819 = vmatprep.subr.bf16.mxu0 %v756
    %820 = vmatpush1.bf16.msra.mxu0 %v755
    %821 = vmatprep.mubr.bf16.mxu0 %v617
    %822 = vmatmul.mubr.bf16.gmra.mrb[0].mxu0 %v616
    %v823 = vpop.f32.mrb[0].mxu0
    %v824 = vadd.f32 %v622, %v823
    %v825 = vpop.f32.mrb[0].mxu0
    %v826 = vadd.f32 %v626, %v825
    %v827 = vpop.f32.mrb[0].mxu0
    %v828 = vadd.f32 %v622, %v827
    %v829 = vpop.f32.mrb[0].mxu0
    %v830 = vadd.f32 %v626, %v829
    %831 = vdwg.mxu0
    %v832 = vmax.f32 %v824, 0.0
    %v833 = vmax.f32 %v826, 0.0
    %v834 = vmax.f32 %v828, 0.0
    %v835 = vmax.f32 %v830, 0.0
    %v836 = vpack.c.bf16 %v834, %v832
    %v837 = vpack.c.bf16 %v835, %v833
    %v839 = vlaneseq
    %v840 = vshrl.u32 %v839, 7
    %v841 = vsub.s32 0, %v840
    %v842 = vrot.slane %v251, %v841
    %v843 = vlaneseq
    %v844 = vshrl.u32 %v843, 7
    %v845 = vsub.s32 1, %v844
    %v846 = vrot.slane %v251, %v845
    %v847 = vlaneseq
    %v848 = vshrl.u32 %v847, 7
    %v849 = vsub.s32 2, %v848
    %v850 = vrot.slane %v251, %v849
    %v851 = vlaneseq
    %v852 = vshrl.u32 %v851, 7
    %v853 = vsub.s32 3, %v852
    %v854 = vrot.slane %v251, %v853
    %v923 = vunpack.c.l.b16 %v187
    %v924 = vunpack.c.h.b16 %v187
    %v925 = vunpack.c.l.b16 %v188
    %v926 = vunpack.c.h.b16 %v188
    %v927 = vunpack.c.l.b16 %v189
    %v928 = vunpack.c.h.b16 %v189
    %v929 = vunpack.c.l.b16 %v190
    %v930 = vunpack.c.h.b16 %v190
    %v931 = vunpack.c.l.b16 %v191
    %v932 = vunpack.c.h.b16 %v191
    %v933 = vunpack.c.l.b16 %v192
    %v934 = vunpack.c.h.b16 %v192
    %v935 = vunpack.c.l.b16 %v193
    %v936 = vunpack.c.h.b16 %v193
    %v937 = vunpack.c.l.b16 %v194
    %v938 = vunpack.c.h.b16 %v194
    %v939 = vunpack.c.l.b16 %v195
    %v940 = vunpack.c.h.b16 %v195
    %v941 = vunpack.c.l.b16 %v196
    %v942 = vunpack.c.h.b16 %v196
    %v943 = vunpack.c.l.b16 %v197
    %v944 = vunpack.c.h.b16 %v197
    %v945 = vunpack.c.l.b16 %v198
    %v946 = vunpack.c.h.b16 %v198
    %v947 = vunpack.c.l.b16 %v199
    %v948 = vunpack.c.h.b16 %v199
    %v949 = vunpack.c.l.b16 %v200
    %v950 = vunpack.c.h.b16 %v200
    %v951 = vunpack.c.l.b16 %v201
    %v952 = vunpack.c.h.b16 %v201
    %v953 = vunpack.c.l.b16 %v202
    %v954 = vunpack.c.h.b16 %v202
    %v955 = vunpack.c.l.b16 %v203
    %v956 = vunpack.c.h.b16 %v203
    %v957 = vunpack.c.l.b16 %v204
    %v958 = vunpack.c.h.b16 %v204
    %v959 = vunpack.c.l.b16 %v205
    %v960 = vunpack.c.h.b16 %v205
    %v961 = vunpack.c.l.b16 %v206
    %v962 = vunpack.c.h.b16 %v206
    %v963 = vunpack.c.l.b16 %v207
    %v964 = vunpack.c.h.b16 %v207
    %v965 = vunpack.c.l.b16 %v208
    %v966 = vunpack.c.h.b16 %v208
    %v967 = vunpack.c.l.b16 %v209
    %v968 = vunpack.c.h.b16 %v209
    %v969 = vunpack.c.l.b16 %v210
    %v970 = vunpack.c.h.b16 %v210
    %v971 = vunpack.c.l.b16 %v211
    %v972 = vunpack.c.h.b16 %v211
    %v973 = vunpack.c.l.b16 %v212
    %v974 = vunpack.c.h.b16 %v212
    %v975 = vunpack.c.l.b16 %v213
    %v976 = vunpack.c.h.b16 %v213
    %v977 = vunpack.c.l.b16 %v214
    %v978 = vunpack.c.h.b16 %v214
    %v979 = vunpack.c.l.b16 %v215
    %v980 = vunpack.c.h.b16 %v215
    %v981 = vunpack.c.l.b16 %v216
    %v982 = vunpack.c.h.b16 %v216
    %v983 = vunpack.c.l.b16 %v217
    %v984 = vunpack.c.h.b16 %v217
    %v985 = vunpack.c.l.b16 %v218
    %v986 = vunpack.c.h.b16 %v218
    %v987 = vunpack.c.l.b16 %v219
    %v988 = vunpack.c.h.b16 %v219
    %v989 = vunpack.c.l.b16 %v220
    %v990 = vunpack.c.h.b16 %v220
    %v991 = vunpack.c.l.b16 %v221
    %v992 = vunpack.c.h.b16 %v221
    %v993 = vunpack.c.l.b16 %v222
    %v994 = vunpack.c.h.b16 %v222
    %v995 = vunpack.c.l.b16 %v223
    %v996 = vunpack.c.h.b16 %v223
    %v997 = vunpack.c.l.b16 %v224
    %v998 = vunpack.c.h.b16 %v224
    %v999 = vunpack.c.l.b16 %v225
    %v1000 = vunpack.c.h.b16 %v225
    %v1001 = vunpack.c.l.b16 %v226
    %v1002 = vunpack.c.h.b16 %v226
    %v1003 = vunpack.c.l.b16 %v227
    %v1004 = vunpack.c.h.b16 %v227
    %v1005 = vunpack.c.l.b16 %v228
    %v1006 = vunpack.c.h.b16 %v228
    %v1007 = vunpack.c.l.b16 %v229
    %v1008 = vunpack.c.h.b16 %v229
    %v1009 = vunpack.c.l.b16 %v230
    %v1010 = vunpack.c.h.b16 %v230
    %v1011 = vunpack.c.l.b16 %v231
    %v1012 = vunpack.c.h.b16 %v231
    %v1013 = vunpack.c.l.b16 %v232
    %v1014 = vunpack.c.h.b16 %v232
    %v1015 = vunpack.c.l.b16 %v233
    %v1016 = vunpack.c.h.b16 %v233
    %v1017 = vunpack.c.l.b16 %v234
    %v1018 = vunpack.c.h.b16 %v234
    %v1019 = vunpack.c.l.b16 %v235
    %v1020 = vunpack.c.h.b16 %v235
    %v1021 = vunpack.c.l.b16 %v236
    %v1022 = vunpack.c.h.b16 %v236
    %v1023 = vunpack.c.l.b16 %v237
    %v1024 = vunpack.c.h.b16 %v237
    %v1025 = vunpack.c.l.b16 %v238
    %v1026 = vunpack.c.h.b16 %v238
    %v1027 = vunpack.c.l.b16 %v239
    %v1028 = vunpack.c.h.b16 %v239
    %v1029 = vunpack.c.l.b16 %v240
    %v1030 = vunpack.c.h.b16 %v240
    %v1031 = vunpack.c.l.b16 %v241
    %v1032 = vunpack.c.h.b16 %v241
    %v1033 = vunpack.c.l.b16 %v242
    %v1034 = vunpack.c.h.b16 %v242
    %v1035 = vunpack.c.l.b16 %v243
    %v1036 = vunpack.c.h.b16 %v243
    %v1037 = vunpack.c.l.b16 %v244
    %v1038 = vunpack.c.h.b16 %v244
    %v1039 = vunpack.c.l.b16 %v245
    %v1040 = vunpack.c.h.b16 %v245
    %v1041 = vunpack.c.l.b16 %v246
    %v1042 = vunpack.c.h.b16 %v246
    %v1043 = vunpack.c.l.b16 %v247
    %v1044 = vunpack.c.h.b16 %v247
    %v1045 = vunpack.c.l.b16 %v248
    %v1046 = vunpack.c.h.b16 %v248
    %v1047 = vunpack.c.l.b16 %v249
    %v1048 = vunpack.c.h.b16 %v249
    %v1049 = vunpack.c.l.b16 %v250
    %v1050 = vunpack.c.h.b16 %v250
    %v1051 = vpack.c.b16 %v927, %v923
    %v1052 = vpack.c.b16 %v928, %v924
    %v1053 = vpack.c.b16 %v929, %v925
    %v1054 = vpack.c.b16 %v930, %v926
    %v1055 = vpack.c.b16 %v935, %v931
    %v1056 = vpack.c.b16 %v936, %v932
    %v1057 = vpack.c.b16 %v937, %v933
    %v1058 = vpack.c.b16 %v938, %v934
    %v1059 = vpack.c.b16 %v943, %v939
    %v1060 = vpack.c.b16 %v944, %v940
    %v1061 = vpack.c.b16 %v945, %v941
    %v1062 = vpack.c.b16 %v946, %v942
    %v1063 = vpack.c.b16 %v951, %v947
    %v1064 = vpack.c.b16 %v952, %v948
    %v1065 = vpack.c.b16 %v953, %v949
    %v1066 = vpack.c.b16 %v954, %v950
    %v1067 = vpack.c.b16 %v959, %v955
    %v1068 = vpack.c.b16 %v960, %v956
    %v1069 = vpack.c.b16 %v961, %v957
    %v1070 = vpack.c.b16 %v962, %v958
    %v1071 = vpack.c.b16 %v967, %v963
    %v1072 = vpack.c.b16 %v968, %v964
    %v1073 = vpack.c.b16 %v969, %v965
    %v1074 = vpack.c.b16 %v970, %v966
    %v1075 = vpack.c.b16 %v975, %v971
    %v1076 = vpack.c.b16 %v976, %v972
    %v1077 = vpack.c.b16 %v977, %v973
    %v1078 = vpack.c.b16 %v978, %v974
    %v1079 = vpack.c.b16 %v983, %v979
    %v1080 = vpack.c.b16 %v984, %v980
    %v1081 = vpack.c.b16 %v985, %v981
    %v1082 = vpack.c.b16 %v986, %v982
    %v1083 = vpack.c.b16 %v991, %v987
    %v1084 = vpack.c.b16 %v992, %v988
    %v1085 = vpack.c.b16 %v993, %v989
    %v1086 = vpack.c.b16 %v994, %v990
    %v1087 = vpack.c.b16 %v999, %v995
    %v1088 = vpack.c.b16 %v1000, %v996
    %v1089 = vpack.c.b16 %v1001, %v997
    %v1090 = vpack.c.b16 %v1002, %v998
    %v1091 = vpack.c.b16 %v1007, %v1003
    %v1092 = vpack.c.b16 %v1008, %v1004
    %v1093 = vpack.c.b16 %v1009, %v1005
    %v1094 = vpack.c.b16 %v1010, %v1006
    %v1095 = vpack.c.b16 %v1015, %v1011
    %v1096 = vpack.c.b16 %v1016, %v1012
    %v1097 = vpack.c.b16 %v1017, %v1013
    %v1098 = vpack.c.b16 %v1018, %v1014
    %v1099 = vpack.c.b16 %v1023, %v1019
    %v1100 = vpack.c.b16 %v1024, %v1020
    %v1101 = vpack.c.b16 %v1025, %v1021
    %v1102 = vpack.c.b16 %v1026, %v1022
    %v1103 = vpack.c.b16 %v1031, %v1027
    %v1104 = vpack.c.b16 %v1032, %v1028
    %v1105 = vpack.c.b16 %v1033, %v1029
    %v1106 = vpack.c.b16 %v1034, %v1030
    %v1107 = vpack.c.b16 %v1039, %v1035
    %v1108 = vpack.c.b16 %v1040, %v1036
    %v1109 = vpack.c.b16 %v1041, %v1037
    %v1110 = vpack.c.b16 %v1042, %v1038
    %v1111 = vpack.c.b16 %v1047, %v1043
    %v1112 = vpack.c.b16 %v1048, %v1044
    %v1113 = vpack.c.b16 %v1049, %v1045
    %v1114 = vpack.c.b16 %v1050, %v1046
    %1179 = vmatprep.subr.bf16.mxu0 %v1052
    %1180 = vmatpush1.bf16.msra.mxu0 %v1051
    %1181 = vmatprep.subr.bf16.mxu0 %v1056
    %1182 = vmatpush1.bf16.msra.mxu0 %v1055
    %1183 = vmatprep.subr.bf16.mxu0 %v1060
    %1184 = vmatpush1.bf16.msra.mxu0 %v1059
    %1185 = vmatprep.subr.bf16.mxu0 %v1064
    %1186 = vmatpush1.bf16.msra.mxu0 %v1063
    %1187 = vmatprep.subr.bf16.mxu0 %v1068
    %1188 = vmatpush1.bf16.msra.mxu0 %v1067
    %1189 = vmatprep.subr.bf16.mxu0 %v1072
    %1190 = vmatpush1.bf16.msra.mxu0 %v1071
    %1191 = vmatprep.subr.bf16.mxu0 %v1076
    %1192 = vmatpush1.bf16.msra.mxu0 %v1075
    %1193 = vmatprep.subr.bf16.mxu0 %v1080
    %1194 = vmatpush1.bf16.msra.mxu0 %v1079
    %1195 = vmatprep.subr.bf16.mxu0 %v1084
    %1196 = vmatpush1.bf16.msra.mxu0 %v1083
    %1197 = vmatprep.subr.bf16.mxu0 %v1088
    %1198 = vmatpush1.bf16.msra.mxu0 %v1087
    %1199 = vmatprep.subr.bf16.mxu0 %v1092
    %1200 = vmatpush1.bf16.msra.mxu0 %v1091
    %1201 = vmatprep.subr.bf16.mxu0 %v1096
    %1202 = vmatpush1.bf16.msra.mxu0 %v1095
    %1203 = vmatprep.subr.bf16.mxu0 %v1100
    %1204 = vmatpush1.bf16.msra.mxu0 %v1099
    %1205 = vmatprep.subr.bf16.mxu0 %v1104
    %1206 = vmatpush1.bf16.msra.mxu0 %v1103
    %1207 = vmatprep.subr.bf16.mxu0 %v1108
    %1208 = vmatpush1.bf16.msra.mxu0 %v1107
    %1209 = vmatprep.subr.bf16.mxu0 %v1112
    %1210 = vmatpush1.bf16.msra.mxu0 %v1111
    %1211 = vmatprep.mubr.bf16.mxu0 %v837
    %1212 = vmatmul.mubr.bf16.gmra.mrb[0].mxu0 %v836
    %v1213 = vpop.f32.mrb[0].mxu0
    %v1214 = vadd.f32 %v842, %v1213
    %v1215 = vpop.f32.mrb[0].mxu0
    %v1216 = vadd.f32 %v846, %v1215
    %v1217 = vpop.f32.mrb[0].mxu0
    %v1218 = vadd.f32 %v842, %v1217
    %v1219 = vpop.f32.mrb[0].mxu0
    %v1220 = vadd.f32 %v846, %v1219
    %1221 = vdwg.mxu0
    %1222 = vmatprep.subr.bf16.mxu0 %v1054
    %1223 = vmatpush1.bf16.msra.mxu0 %v1053
    %1224 = vmatprep.subr.bf16.mxu0 %v1058
    %1225 = vmatpush1.bf16.msra.mxu0 %v1057
    %1226 = vmatprep.subr.bf16.mxu0 %v1062
    %1227 = vmatpush1.bf16.msra.mxu0 %v1061
    %1228 = vmatprep.subr.bf16.mxu0 %v1066
    %1229 = vmatpush1.bf16.msra.mxu0 %v1065
    %1230 = vmatprep.subr.bf16.mxu0 %v1070
    %1231 = vmatpush1.bf16.msra.mxu0 %v1069
    %1232 = vmatprep.subr.bf16.mxu0 %v1074
    %1233 = vmatpush1.bf16.msra.mxu0 %v1073
    %1234 = vmatprep.subr.bf16.mxu0 %v1078
    %1235 = vmatpush1.bf16.msra.mxu0 %v1077
    %1236 = vmatprep.subr.bf16.mxu0 %v1082
    %1237 = vmatpush1.bf16.msra.mxu0 %v1081
    %1238 = vmatprep.subr.bf16.mxu0 %v1086
    %1239 = vmatpush1.bf16.msra.mxu0 %v1085
    %1240 = vmatprep.subr.bf16.mxu0 %v1090
    %1241 = vmatpush1.bf16.msra.mxu0 %v1089
    %1242 = vmatprep.subr.bf16.mxu0 %v1094
    %1243 = vmatpush1.bf16.msra.mxu0 %v1093
    %1244 = vmatprep.subr.bf16.mxu0 %v1098
    %1245 = vmatpush1.bf16.msra.mxu0 %v1097
    %1246 = vmatprep.subr.bf16.mxu0 %v1102
    %1247 = vmatpush1.bf16.msra.mxu0 %v1101
    %1248 = vmatprep.subr.bf16.mxu0 %v1106
    %1249 = vmatpush1.bf16.msra.mxu0 %v1105
    %1250 = vmatprep.subr.bf16.mxu0 %v1110
    %1251 = vmatpush1.bf16.msra.mxu0 %v1109
    %1252 = vmatprep.subr.bf16.mxu0 %v1114
    %1253 = vmatpush1.bf16.msra.mxu0 %v1113
    %1254 = vmatprep.mubr.bf16.mxu0 %v837
    %1255 = vmatmul.mubr.bf16.gmra.mrb[0].mxu0 %v836
    %v1256 = vpop.f32.mrb[0].mxu0
    %v1257 = vadd.f32 %v850, %v1256
    %v1258 = vpop.f32.mrb[0].mxu0
    %v1259 = vadd.f32 %v854, %v1258
    %v1260 = vpop.f32.mrb[0].mxu0
    %v1261 = vadd.f32 %v850, %v1260
    %v1262 = vpop.f32.mrb[0].mxu0
    %v1263 = vadd.f32 %v854, %v1262
    %1264 = vdwg.mxu0
    %1265 = vst [vmem:[#allocation11] sm:$0xff] %v1214
    %1266 = vst [vmem:[#allocation11 + $0x8] sm:$0xff] %v1216
    %1267 = vst [vmem:[#allocation11 + $0x10] sm:$0xff] %v1257
    %1268 = vst [vmem:[#allocation11 + $0x18] sm:$0xff] %v1259
    %1269 = vst [vmem:[#allocation11 + $0x20] sm:$0xff] %v1218
    %1270 = vst [vmem:[#allocation11 + $0x28] sm:$0xff] %v1220
    %1271 = vst [vmem:[#allocation11 + $0x30] sm:$0xff] %v1261
    %1272 = vst [vmem:[#allocation11 + $0x38] sm:$0xff] %v1263
    // Predicated region
    $region58: #{tpu_custom_call.1} parent=1 // pred_check
      _
    $region59: #{tpu_custom_call.1} parent=1 // pred_check_branch
      %1274 = sbr.rel (0) target = $region61
    $region60: #{tpu_custom_call.1} parent=1 // pred_region
      %s1276 = ssub.s32 1024, 1024
      %1277 = vsyncadd [#allocation4], %s1276
      %s1278 = sshll.u32 [#allocation11], 4
      %s1279 = int_to_ptr.vmem [resolvable:$true] %s1278
      %1284 = dma.vmem_to_hbm [thread:$0]  %s1279, 1024, %s9, [#allocation4], 512, 512, 32
    $region61: #{tpu_custom_call.1} parent=1 // pred_fallthru
      _
    // Predicated region
    $region62: #{tpu_custom_call.1} parent=1 // pred_check
      _
    $region63: #{tpu_custom_call.1} parent=1 // pred_check_branch
      %1286 = sbr.rel (0) target = $region65
    $region64: #{tpu_custom_call.1} parent=1 // pred_region
      %1287 = dma.done [#allocation4], 1024
    $region65: #{tpu_custom_call.1} parent=1 // pred_fallthru
      _
    %1288 = vsyncpa [#allocation3], 1
    %1289 = vsyncpa [#allocation6], 1
    %1290 = vsyncpa [#allocation9], 1
    %1291 = vsyncpa [#allocation4], 1

</llo_original>
